<compile_context>
chip_gen: v5e
topology: v5e:2x2
jax: 0.10.0
libtpu: 0.0.40
codegen_flags: <defaults>
</compile_context>

<pallas_src>
import jax
import jax.numpy as jnp
from jax.experimental import pallas as pl
from jax.experimental.pallas import tpu as pltpu


def _round_up(x, m):
    return (x + m - 1) // m * m


def _classifier_kernel(h_ref, w1_ref, b1_ref, w2_ref, b2_ref, out_ref):
    # Cast the streamed tile to bf16 on the VPU (hidden arrives in its native
    # dtype; this avoids a separate XLA convert pass over HBM).
    h = h_ref[...].astype(w1_ref.dtype)                     # [TB, D_in] bf16
    # Linear1: MXU matmul, f32 accumulation; bias + tanh in f32.
    pre = jnp.dot(h, w1_ref[...], preferred_element_type=jnp.float32)
    pre = jnp.tanh(pre + b1_ref[...])
    # Linear2 -> logits (unpadded class dim; store directly in output dtype).
    logits = jnp.dot(pre.astype(w2_ref.dtype), w2_ref[...],
                     preferred_element_type=jnp.float32) + b2_ref[...]
    out_ref[...] = logits.astype(out_ref.dtype)


def prepare_classifier_params(w1, b1, w2, b2, *, compute_dtype=jnp.bfloat16):
    """Pad/cast parameters once (hoist out of the per-step forward).

    w1: [D_in, D_pre]  b1: [D_pre] or [1, D_pre]
    w2: [D_pre, C]     b2: [C]     or [1, C]
    (weights stored [in, out], i.e. transposed from PyTorch nn.Linear)
    """
    d_in, d_pre = w1.shape
    n_cls = w2.shape[1]
    # bf16 sublane packing only (16); the intermediate never touches HBM so
    # lane (128) padding of d_pre is unnecessary. Zero padding keeps the math
    # exact: tanh(0) = 0 and zero W2 rows contribute nothing.
    d_pre_p = _round_up(d_pre, 16)

    w1p = jnp.zeros((d_in, d_pre_p), compute_dtype)
    w1p = w1p.at[:, :d_pre].set(w1.astype(compute_dtype))
    b1p = jnp.zeros((1, d_pre_p), jnp.float32)
    b1p = b1p.at[:, :d_pre].set(jnp.asarray(b1, jnp.float32).reshape(1, -1))
    w2p = jnp.zeros((d_pre_p, n_cls), compute_dtype)
    w2p = w2p.at[:d_pre, :].set(w2.astype(compute_dtype))
    b2p = jnp.asarray(b2, jnp.float32).reshape(1, n_cls)
    return w1p, b1p, w2p, b2p


def classifier_forward(hidden, w1p, b1p, w2p, b2p, *, batch_tile=2048):
    """hidden: [B, D_in]; prepared params from prepare_classifier_params.
    Returns logits [B, num_classes] in hidden.dtype."""
    B, d_in = hidden.shape
    d_pre_p = w1p.shape[1]
    n_cls = w2p.shape[1]
    out_dtype = hidden.dtype

    # Batch tile: as large as possible (sweet spot 1-4K rows for mem-bound
    # kernels), multiple of 8 when actually tiling. When B > 8, cap so the
    # grid has >= 2 steps and the "parallel" axis shards across v7x's 2 TCs.
    tb = min(batch_tile, B)
    if B > 8:
        half = -(-B // 2)
        tb = min(tb, max(8, (half // 8) * 8))
    if tb < B:
        tb = max(8, (tb // 8) * 8)

    # Explicit scoped-VMEM budget (everything default double-buffered).
    h_item = jnp.dtype(hidden.dtype).itemsize
    o_item = jnp.dtype(out_dtype).itemsize
    w_item = jnp.dtype(w1p.dtype).itemsize
    vmem_needed = (
        2 * tb * d_in * h_item                        # streamed hidden
        + 2 * tb * n_cls * o_item                     # streamed output
        + 2 * (d_in * d_pre_p + d_pre_p * n_cls) * w_item  # resident weights (x2 bufs)
        + 2 * (d_pre_p + n_cls) * 4                   # biases
        + 2 * tb * d_pre_p * 4                        # in-kernel intermediates headroom
    )
    vmem_limit = int(min(max(vmem_needed + (8 << 20), 16 << 20), 48 << 20))

    call = pl.pallas_call(
        _classifier_kernel,
        out_shape=jax.ShapeDtypeStruct((B, n_cls), out_dtype),
        grid_spec=pltpu.PrefetchScalarGridSpec(
            num_scalar_prefetch=0,
            grid=(pl.cdiv(B, tb),),
            in_specs=[
                pl.BlockSpec((tb, d_in), lambda i: (i, 0)),        # hidden (streams)
                pl.BlockSpec((d_in, d_pre_p), lambda i: (0, 0)),   # W1 (resident)
                pl.BlockSpec((1, d_pre_p), lambda i: (0, 0)),      # b1
                pl.BlockSpec((d_pre_p, n_cls), lambda i: (0, 0)),  # W2 (resident)
                pl.BlockSpec((1, n_cls), lambda i: (0, 0)),        # b2
            ],
            out_specs=pl.BlockSpec((tb, n_cls), lambda i: (i, 0)),
        ),
        compiler_params=pltpu.CompilerParams(
            dimension_semantics=("parallel",),
            vmem_limit_bytes=vmem_limit),
    )
    return call(hidden, w1p, b1p, w2p, b2p)


def _reference(hidden, w1, b1, w2, b2):
    pre = jnp.tanh(hidden @ w1 + jnp.asarray(b1).reshape(1, -1))
    return pre @ w2 + jnp.asarray(b2).reshape(1, -1)


if __name__ == "__main__":
    # Small shapes implied by the module:
    #   input_dim = 32, pre_classifier_dim = 64, num_classes = 10, batch = 8
    B, D_IN, D_PRE, N_CLS = 8, 32, 64, 10

    key = jax.random.PRNGKey(0)
    k_h, k_w1, k_b1, k_w2, k_b2 = jax.random.split(key, 5)

    hidden = jax.random.normal(k_h, (B, D_IN), dtype=jnp.float32)
    # Deterministic synthetic parameters (nn.Linear-like scale), stored as
    # [in, out] (transposed from PyTorch's [out, in]).
    w1 = jax.random.uniform(k_w1, (D_IN, D_PRE), jnp.float32,
                            minval=-1.0, maxval=1.0) / jnp.sqrt(D_IN)
    b1 = (jax.random.uniform(k_b1, (1, D_PRE), jnp.float32,
                             minval=-1.0, maxval=1.0) / jnp.sqrt(D_IN))
    w2 = jax.random.uniform(k_w2, (D_PRE, N_CLS), jnp.float32,
                            minval=-1.0, maxval=1.0) / jnp.sqrt(D_PRE)
    b2 = (jax.random.uniform(k_b2, (1, N_CLS), jnp.float32,
                             minval=-1.0, maxval=1.0) / jnp.sqrt(D_PRE))

    # Pad/cast parameters once (in real use: hoist or const-fold under jit).
    params = prepare_classifier_params(w1, b1, w2, b2)

    logits = classifier_forward(hidden, *params)
    logits = jax.block_until_ready(logits)

    ref = _reference(hidden, w1, b1, w2, b2)
    assert logits.shape == (B, N_CLS)
    assert logits.dtype == hidden.dtype
    # bf16 MXU inputs (f32 accumulation) -> relaxed tolerance vs pure-f32 ref.
    assert jnp.allclose(logits, ref, atol=5e-2, rtol=5e-2), "mismatch vs reference"

    print("KERNEL_OK")
</pallas_src>

<mosaic_0001>
module attributes {stable_mosaic.version = 11 : i64} {
  func.func @_classifier_kernel(%arg0: i32, %arg1: memref<8x32xf32, #tpu.memory_space<vmem>>, %arg2: memref<32x64xbf16, #tpu.memory_space<vmem>>, %arg3: memref<1x64xf32, #tpu.memory_space<vmem>>, %arg4: memref<64x10xbf16, #tpu.memory_space<vmem>>, %arg5: memref<1x10xf32, #tpu.memory_space<vmem>>, %arg6: memref<8x10xf32, #tpu.memory_space<vmem>>) attributes {dimension_semantics = [#tpu.dimension_semantics<parallel>], iteration_bounds = array<i64: 1>, scalar_prefetch = 0 : i64, scratch_operands = 0 : i64, tpu.core_type = #tpu.core_type<tc>, window_params = [{transform_indices = @transform_0, window_bounds = array<i64: 8, 32>}, {pipeline_mode = #tpu.pipeline_mode<synchronous>, transform_indices = @transform_1, window_bounds = array<i64: 32, 64>}, {pipeline_mode = #tpu.pipeline_mode<synchronous>, transform_indices = @transform_2, window_bounds = array<i64: 1, 64>}, {pipeline_mode = #tpu.pipeline_mode<synchronous>, transform_indices = @transform_3, window_bounds = array<i64: 64, 10>}, {pipeline_mode = #tpu.pipeline_mode<synchronous>, transform_indices = @transform_4, window_bounds = array<i64: 1, 10>}, {transform_indices = @transform_5, window_bounds = array<i64: 8, 10>}]} {
    %c0 = arith.constant 0 : index
    %c0_0 = arith.constant 0 : index
    %0 = vector.load %arg1[%c0, %c0_0] : memref<8x32xf32, #tpu.memory_space<vmem>>, vector<8x32xf32>
    %1 = arith.truncf %0 : vector<8x32xf32> to vector<8x32xbf16>
    %c0_1 = arith.constant 0 : index
    %c0_2 = arith.constant 0 : index
    %2 = vector.load %arg2[%c0_1, %c0_2] : memref<32x64xbf16, #tpu.memory_space<vmem>>, vector<32x64xbf16>
    %cst = arith.constant dense<0.000000e+00> : vector<8x64xf32>
    %3 = tpu.matmul %1, %2, %cst {dimension_numbers = #tpu.dot_dimension_numbers<[1], [0], [0], [1], [0, 0, 1, 1], [], []>} : vector<8x32xbf16>, vector<32x64xbf16>, vector<8x64xf32> -> vector<8x64xf32>
    %c0_3 = arith.constant 0 : index
    %c0_4 = arith.constant 0 : index
    %4 = vector.load %arg3[%c0_3, %c0_4] : memref<1x64xf32, #tpu.memory_space<vmem>>, vector<1x64xf32>
    %5 = vector.broadcast %4 : vector<1x64xf32> to vector<8x64xf32>
    %6 = arith.addf %3, %5 : vector<8x64xf32>
    %7 = math.tanh %6 : vector<8x64xf32>
    %8 = arith.truncf %7 : vector<8x64xf32> to vector<8x64xbf16>
    %c0_5 = arith.constant 0 : index
    %c0_6 = arith.constant 0 : index
    %9 = vector.load %arg4[%c0_5, %c0_6] : memref<64x10xbf16, #tpu.memory_space<vmem>>, vector<64x10xbf16>
    %cst_7 = arith.constant dense<0.000000e+00> : vector<8x10xf32>
    %10 = tpu.matmul %8, %9, %cst_7 {dimension_numbers = #tpu.dot_dimension_numbers<[1], [0], [0], [1], [0, 0, 1, 1], [], []>} : vector<8x64xbf16>, vector<64x10xbf16>, vector<8x10xf32> -> vector<8x10xf32>
    %c0_8 = arith.constant 0 : index
    %c0_9 = arith.constant 0 : index
    %11 = vector.load %arg5[%c0_8, %c0_9] : memref<1x10xf32, #tpu.memory_space<vmem>>, vector<1x10xf32>
    %12 = vector.broadcast %11 : vector<1x10xf32> to vector<8x10xf32>
    %13 = arith.addf %10, %12 : vector<8x10xf32>
    %c0_10 = arith.constant 0 : index
    %c0_11 = arith.constant 0 : index
    %14 = vector.load %arg6[%c0_10, %c0_11] : memref<8x10xf32, #tpu.memory_space<vmem>>, vector<8x10xf32>
    tpu.vector_store %arg6[%c0_10, %c0_11], %13 {strides = array<i32>} : memref<8x10xf32, #tpu.memory_space<vmem>>, vector<8x10xf32>,
    return
  }
  func.func @transform_0(%arg0: i32) -> (i32, i32) {
    %c0_i32 = arith.constant 0 : i32
    %c0_i32_0 = arith.constant 0 : i32
    return %arg0, %c0_i32 : i32, i32
  }
  func.func @transform_1(%arg0: i32) -> (i32, i32) {
    %c0_i32 = arith.constant 0 : i32
    %c0_i32_0 = arith.constant 0 : i32
    %c0_i32_1 = arith.constant 0 : i32
    return %c0_i32, %c0_i32_0 : i32, i32
  }
  func.func @transform_2(%arg0: i32) -> (i32, i32) {
    %c0_i32 = arith.constant 0 : i32
    %c0_i32_0 = arith.constant 0 : i32
    %c0_i32_1 = arith.constant 0 : i32
    return %c0_i32, %c0_i32_0 : i32, i32
  }
  func.func @transform_3(%arg0: i32) -> (i32, i32) {
    %c0_i32 = arith.constant 0 : i32
    %c0_i32_0 = arith.constant 0 : i32
    %c0_i32_1 = arith.constant 0 : i32
    return %c0_i32, %c0_i32_0 : i32, i32
  }
  func.func @transform_4(%arg0: i32) -> (i32, i32) {
    %c0_i32 = arith.constant 0 : i32
    %c0_i32_0 = arith.constant 0 : i32
    %c0_i32_1 = arith.constant 0 : i32
    return %c0_i32, %c0_i32_0 : i32, i32
  }
  func.func @transform_5(%arg0: i32) -> (i32, i32) {
    %c0_i32 = arith.constant 0 : i32
    %c0_i32_0 = arith.constant 0 : i32
    return %arg0, %c0_i32 : i32, i32
  }
}

</mosaic_0001>

<llo_original>
// kernel: tpu_custom_call.1
$region0: #{tpu_custom_call.1}
  #allocation0 [shape = 'u32[]', space=smem, size = 0x4, offset = 0x4, fixed_abs, tag = 'smem constant byte address 0x4 - core index']
  #allocation1 [shape = 'u32[72,128]{1,0:T(1,128)}', space=vmem, size = 0x9000, scoped, tag = 'internal scratch']
  %s0 = inlined_call_operand.vmem [shape: f32[8,32], index: 0, kind: input, shape index: {}]
  %s1 = inlined_call_operand.vmem [shape: bf16[32,64], index: 1, kind: input, shape index: {}]
  %s2 = inlined_call_operand.vmem [shape: f32[1,64], index: 2, kind: input, shape index: {}]
  %s3 = inlined_call_operand.vmem [shape: bf16[64,10], index: 3, kind: input, shape index: {}]
  %s4 = inlined_call_operand.vmem [shape: f32[1,10], index: 4, kind: input, shape index: {}]
  %s5 = inlined_call_operand.hbm [shape: f32[8,10], index: 5, kind: output, shape index: {}]
  %s6 = sld [smem:[#allocation0]]
  $region30: #{tpu_custom_call.1} parent=0
    _
  %s8 = ssub.s32 1, %s6
  %s9 = scalar_select 0, %s8, %s6
  $region1: #{tpu_custom_call.1} parent=0
    #allocation2 [shape = 'u8[4096]{0}', space=vmem, size = 0x1000, scoped, tag = 'output window, operand 0, single buffered']
    #allocation3 [shape = 's32[1]{0}', space=sflag, size = 0x4, scoped, tag = 'scoped memory for tpu_custom_call.1']
    %10 = vsyncpa [#allocation3], 0
    // Predicated region
    $region2: #{tpu_custom_call.1} parent=1 // pred_check
      _
    $region3: #{tpu_custom_call.1} parent=1 // pred_check_branch
      %12 = sbr.rel (0) target = $region5
    $region4: #{tpu_custom_call.1} parent=1 // pred_region
      _
    $region5: #{tpu_custom_call.1} parent=1 // pred_fallthru
      _
    // Predicated region
    $region6: #{tpu_custom_call.1} parent=1 // pred_check
      _
    $region7: #{tpu_custom_call.1} parent=1 // pred_check_branch
      %14 = sbr.rel (0) target = $region9
    $region8: #{tpu_custom_call.1} parent=1 // pred_region
      _
    $region9: #{tpu_custom_call.1} parent=1 // pred_fallthru
      _
    // Predicated region
    $region10: #{tpu_custom_call.1} parent=1 // pred_check
      _
    $region11: #{tpu_custom_call.1} parent=1 // pred_check_branch
      %16 = sbr.rel (0) target = $region13
    $region12: #{tpu_custom_call.1} parent=1 // pred_region
      _
    $region13: #{tpu_custom_call.1} parent=1 // pred_fallthru
      _
    // Predicated region
    $region14: #{tpu_custom_call.1} parent=1 // pred_check
      _
    $region15: #{tpu_custom_call.1} parent=1 // pred_check_branch
      %18 = sbr.rel (0) target = $region17
    $region16: #{tpu_custom_call.1} parent=1 // pred_region
      _
    $region17: #{tpu_custom_call.1} parent=1 // pred_fallthru
      _
    // Predicated region
    $region18: #{tpu_custom_call.1} parent=1 // pred_check
      _
    $region19: #{tpu_custom_call.1} parent=1 // pred_check_branch
      %20 = sbr.rel (0) target = $region21
    $region20: #{tpu_custom_call.1} parent=1 // pred_region
      _
    $region21: #{tpu_custom_call.1} parent=1 // pred_fallthru
      _
    %v22 = vld [vmem:[%s0] sm:$0xff]
    %v23 = vpack.c.bf16 %v22, %v22
    %v24 = vld [vmem:[%s1] sm:$0xf]
    %v25 = vld [vmem:[%s1 + $0x4] sm:$0xf]
    %v26 = vld [vmem:[%s1 + $0x8] sm:$0xf]
    %v27 = vld [vmem:[%s1 + $0xc] sm:$0xf]
    %v28 = vld [vmem:[%s2] sm:$0x1]
    %v30 = vperm.slane %v28, 0
    %v36 = vunpack.c.l.b16 %v24
    %v37 = vunpack.c.l.b16 %v25
    %v38 = vunpack.c.l.b16 %v26
    %v39 = vunpack.c.l.b16 %v27
    %v40 = vpack.c.b16 %v37, %v36
    %v41 = vpack.c.b16 %v39, %v38
    %vm44 = vcmask 261120
    %v46 = vsel %vm44, %v23, 0
    %48 = vmatpush.bf16.msra.mxu0 0
    %49 = vmatpush.bf16.msra.mxu0 0
    %50 = vmatpush.bf16.msra.mxu0 0
    %51 = vmatpush.bf16.msra.mxu0 0
    %52 = vmatpush.bf16.msra.mxu0 0
    %53 = vmatpush.bf16.msra.mxu0 0
    %54 = vmatpush.bf16.msra.mxu0 %v41
    %55 = vmatpush.bf16.msra.mxu0 %v40
    %56 = vmatmul.bf16.gmra.mxu0 %v46
    %v57 = vpop.f32.mrf.mxu0
    %v58 = vadd.f32 %v30, %v57
    %v59 = vpop.f32.mrf.mxu0
    %60 = vdwg.mxu0
    %v61 = vtanh.pop %v58
    %v62 = vpack.c.bf16 %v61, %v61
    %v63 = vld [vmem:[%s3] sm:$0xf]
    %v64 = vld [vmem:[%s3 + $0x4] sm:$0xf]
    %v65 = vld [vmem:[%s3 + $0x8] sm:$0xf]
    %v66 = vld [vmem:[%s3 + $0xc] sm:$0xf]
    %v67 = vld [vmem:[%s3 + $0x10] sm:$0xf]
    %v68 = vld [vmem:[%s3 + $0x14] sm:$0xf]
    %v69 = vld [vmem:[%s3 + $0x18] sm:$0xf]
    %v70 = vld [vmem:[%s3 + $0x1c] sm:$0xf]
    %v71 = vld [vmem:[%s4] sm:$0x1]
    %v73 = vperm.slane %v71, 0
    %v83 = vunpack.c.l.b16 %v63
    %v84 = vunpack.c.l.b16 %v64
    %v85 = vunpack.c.l.b16 %v65
    %v86 = vunpack.c.l.b16 %v66
    %v87 = vunpack.c.l.b16 %v67
    %v88 = vunpack.c.l.b16 %v68
    %v89 = vunpack.c.l.b16 %v69
    %v90 = vunpack.c.l.b16 %v70
    %v91 = vpack.c.b16 %v84, %v83
    %v92 = vpack.c.b16 %v86, %v85
    %v93 = vpack.c.b16 %v88, %v87
    %v94 = vpack.c.b16 %v90, %v89
    %vm99 = vcmask 523264
    %v101 = vsel %vm99, %v62, 0
    %103 = vmatpush.bf16.msra.mxu0 0
    %104 = vmatpush.bf16.msra.mxu0 0
    %105 = vmatpush.bf16.msra.mxu0 0
    %106 = vmatpush.bf16.msra.mxu0 0
    %107 = vmatpush.bf16.msra.mxu0 %v94
    %108 = vmatpush.bf16.msra.mxu0 %v93
    %109 = vmatpush.bf16.msra.mxu0 %v92
    %110 = vmatpush.bf16.msra.mxu0 %v91
    %111 = vmatmul.bf16.gmra.mxu0 %v101
    %v112 = vpop.f32.mrf.mxu0
    %v113 = vadd.f32 %v73, %v112
    %v114 = vpop.f32.mrf.mxu0
    %115 = vdwg.mxu0
    %vm116 = vcmask 80896
    %117 = vst.msk [vmem:[#allocation2] sm:$0xff] %vm116, %v113
    // Predicated region
    $region22: #{tpu_custom_call.1} parent=1 // pred_check
      _
    $region23: #{tpu_custom_call.1} parent=1 // pred_check_branch
      %119 = sbr.rel (0) target = $region25
    $region24: #{tpu_custom_call.1} parent=1 // pred_region
      %121 = vsyncadd [#allocation3], 0
      %s123 = sshll.u32 [#allocation2], 4
      %s124 = int_to_ptr.vmem [resolvable:$true] %s123
      %s125 = sshll.u32 %s5, 4
      %s126 = int_to_ptr.hbm [resolvable:$true] %s125
      %128 = dma.vmem_to_hbm [thread:$0]  %s124, 128, %s126, [#allocation3]
    $region25: #{tpu_custom_call.1} parent=1 // pred_fallthru
      _
    // Predicated region
    $region26: #{tpu_custom_call.1} parent=1 // pred_check
      _
    $region27: #{tpu_custom_call.1} parent=1 // pred_check_branch
      %130 = sbr.rel (0) target = $region29
    $region28: #{tpu_custom_call.1} parent=1 // pred_region
      %132 = dma.done [#allocation3], 128
    $region29: #{tpu_custom_call.1} parent=1 // pred_fallthru
      _
    %133 = vsyncpa [#allocation3], 1

</llo_original>
